<compile_context>
chip_gen: v7x
topology: tpu7x:2x2x1
jax: 0.10.0
libtpu: 0.0.40
codegen_flags: <defaults>
</compile_context>

<pallas_src>
import jax
import jax.numpy as jnp
from jax.experimental import pallas as pl
from jax.experimental.pallas import tpu as pltpu

Q_LOG_STD_MIN = -5.0
Q_LOG_STD_MAX = 2.0


def _round_up(n, m):
    return ((n + m - 1) // m) * m


# -----------------------------------------------------------------------------
# Kernel: one invocation, all E ensemble members fused along the lane axis.
# -----------------------------------------------------------------------------
def _make_critic_kernel(din, eh, off_w1, off_b1, off_w2, off_b2, off_wm, off_bm):
    """All offsets/sizes are static Python ints -> static, tile-aligned Ref slices."""

    def kernel(x_ref, w_ref, out_ref):
        x = x_ref[...]                                               # (B, Din)

        w1 = w_ref[off_w1:off_w1 + din, :]                           # (Din, E*H)
        b1 = w_ref[off_b1:off_b1 + 1, :]                             # (1, E*H)
        h = jnp.dot(x, w1, preferred_element_type=jnp.float32) + b1
        h = jnp.maximum(h, 0.0)                                      # relu (trunk act)

        w2 = w_ref[off_w2:off_w2 + eh, :]                            # (E*H, E*H) block-diag
        b2 = w_ref[off_b2:off_b2 + 1, :]
        h = jnp.dot(h, w2, preferred_element_type=jnp.float32) + b2
        h = jnp.maximum(h, 0.0)                                      # output_activation_fn=relu

        wm = w_ref[off_wm:off_wm + eh, :]                            # (E*H, E*H) head, lane-padded
        bm = w_ref[off_bm:off_bm + 1, :]
        # Lane-dense (B, E*H) store; only the first E*Dout lanes are real.
        out_ref[...] = jnp.dot(h, wm, preferred_element_type=jnp.float32) + bm

    return kernel


# -----------------------------------------------------------------------------
# One-time weight packing (hoisted out of the per-call path).
# -----------------------------------------------------------------------------
def pack_critic_params(params):
    """Build the single packed VMEM weight slab. Call once per parameter update."""
    w1, b1, w2, b2, wm, bm, log_std = (
        params["w1"], params["b1"], params["w2"], params["b2"],
        params["wm"], params["bm"], params["log_std"],
    )
    E, Din, H = w1.shape
    Dout = wm.shape[-1]
    EH = E * H

    # Sublane-aligned (multiple-of-8) row offsets inside the packed slab.
    off_w1 = 0
    off_b1 = _round_up(Din, 8)
    off_w2 = off_b1 + 8
    off_b2 = off_w2 + _round_up(EH, 8)
    off_wm = off_b2 + 8
    off_bm = off_wm + _round_up(EH, 8)
    rows = off_bm + 8

    # Layer 1: x is shared across members -> concatenate member weights on lanes.
    w1cat = jnp.transpose(w1, (1, 0, 2)).reshape(Din, EH)            # [d, e*H + h] = w1[e,d,h]
    # Layer 2 / head: block-diagonal so each member only sees its own slice.
    eye_e = jnp.eye(E, dtype=jnp.float32)
    w2bd = (eye_e[:, None, :, None] * w2[:, :, None, :]).reshape(EH, EH)
    wmbd = (eye_e[:, None, :, None] * wm[:, :, None, :]).reshape(EH, E * Dout)

    buf = jnp.zeros((rows, EH), jnp.float32)
    buf = buf.at[off_w1:off_w1 + Din, :].set(w1cat.astype(jnp.float32))
    buf = buf.at[off_b1, :].set(b1.reshape(EH).astype(jnp.float32))
    buf = buf.at[off_w2:off_w2 + EH, :].set(w2bd.astype(jnp.float32))
    buf = buf.at[off_b2, :].set(b2.reshape(EH).astype(jnp.float32))
    buf = buf.at[off_wm:off_wm + EH, :E * Dout].set(wmbd.astype(jnp.float32))
    buf = buf.at[off_bm, :E * Dout].set(bm.reshape(E * Dout).astype(jnp.float32))

    meta = dict(E=E, H=H, Din=Din, Dout=Dout,
                offsets=(off_w1, off_b1, off_w2, off_b2, off_wm, off_bm))
    return dict(wbuf=buf, log_std=log_std, meta=meta)


# -----------------------------------------------------------------------------
# Steady-state forward: 2 kernel inputs, 1 lane-dense output, scalar std path in XLA.
# -----------------------------------------------------------------------------
def vectorized_gaussian_critic_forward(x, packed):
    """x: (B, state_dim + action_dim) f32. `packed` is the output of pack_critic_params.

    Returns (q_mean.view(-1,1), q_std.view(-1,1), covariance_matrix) — the
    parameters of the MultivariateNormal constructed by the torch module.
    """
    meta = packed["meta"]
    E, H, Din, Dout = meta["E"], meta["H"], meta["Din"], meta["Dout"]
    EH = E * H
    B = x.shape[0]
    wbuf = packed["wbuf"]

    kernel = _make_critic_kernel(Din, EH, *meta["offsets"])

    flops = 2 * B * (Din * EH + EH * EH + EH * E * Dout)
    bytes_accessed = (x.size + wbuf.size + B * EH) * 4
    vmem = pl.BlockSpec(memory_space=pltpu.MemorySpace.VMEM)

    out = pl.pallas_call(
        kernel,
        out_shape=jax.ShapeDtypeStruct((B, EH), jnp.float32),
        in_specs=[vmem, vmem],
        out_specs=vmem,
        cost_estimate=pl.CostEstimate(
            flops=flops, transcendentals=0, bytes_accessed=bytes_accessed),
        # NOTE: no grid — the whole problem is one step at these shapes (see header).
    )(x.astype(jnp.float32), wbuf)

    # Real output lanes, then reorder exactly like torch's (E,B,Dout).view(-1,1).
    q_be = out[:, :E * Dout]                                         # (B, E*Dout)
    q_mean_flat = q_be.reshape(B, E, Dout).transpose(1, 0, 2).reshape(-1, 1)

    # std path stays outside the kernel: E*Dout scalar clamps/exps, free under XLA.
    q_std = jnp.exp(jnp.clip(packed["log_std"], Q_LOG_STD_MIN, Q_LOG_STD_MAX))  # (E, Dout)
    q_std = jnp.repeat(q_std, Dout, axis=-1)                         # repeat_interleave (no-op Dout=1)
    q_std_flat = q_std.reshape(-1, 1)

    # torch.diag_embed(q_std, offset=0, dim1=1): a diagonal matrix of sigma
    # (NOT sigma^2) — reproduced verbatim from the torch module.
    cov = q_std_flat[:, :, None] * jnp.eye(q_std_flat.shape[-1], dtype=q_std_flat.dtype)

    # TODO(synk): torch.distributions.MultivariateNormal has no Pallas/JAX-array
    # equivalent here; we return its parameters (loc, diag std, covariance) instead.
    return q_mean_flat, q_std_flat, cov


# -----------------------------------------------------------------------------
# Init + pure-JAX reference for correctness checking.
# -----------------------------------------------------------------------------
def _init_params(key, state_dim, action_dim, hidden_dim, num_q, output_dim):
    din = state_dim + action_dim
    ks = jax.random.split(key, 6)
    # edac_init-style: small-ish weights; q_mean head uniform(-0.003, 0.003); log_std zeros.
    w1 = jax.random.normal(ks[0], (num_q, din, hidden_dim), jnp.float32) * (1.0 / jnp.sqrt(din))
    b1 = jnp.zeros((num_q, hidden_dim), jnp.float32)
    w2 = jax.random.normal(ks[1], (num_q, hidden_dim, hidden_dim), jnp.float32) * (1.0 / jnp.sqrt(hidden_dim))
    b2 = jnp.zeros((num_q, hidden_dim), jnp.float32)
    wm = jax.random.uniform(ks[2], (num_q, hidden_dim, output_dim), jnp.float32, -0.003, 0.003)
    bm = jax.random.uniform(ks[3], (num_q, output_dim), jnp.float32, -0.003, 0.003)
    log_std = jnp.zeros((num_q, output_dim), jnp.float32)
    return dict(w1=w1, b1=b1, w2=w2, b2=b2, wm=wm, bm=bm, log_std=log_std)


def _reference_forward(x, params):
    h = jnp.einsum("bd,edh->ebh", x, params["w1"]) + params["b1"][:, None, :]
    h = jnp.maximum(h, 0.0)
    h = jnp.einsum("ebd,edh->ebh", h, params["w2"]) + params["b2"][:, None, :]
    h = jnp.maximum(h, 0.0)
    q_mean = jnp.einsum("ebd,edo->ebo", h, params["wm"]) + params["bm"][:, None, :]
    q_std = jnp.exp(jnp.clip(params["log_std"], Q_LOG_STD_MIN, Q_LOG_STD_MAX))
    return q_mean.reshape(-1, 1), q_std.reshape(-1, 1)


if __name__ == "__main__":
    # Small shapes consistent with the module.
    state_dim, action_dim = 24, 8
    hidden_dim, num_q, output_dim = 32, 5, 1
    batch = 8

    key = jax.random.PRNGKey(0)
    k_x, k_p = jax.random.split(key)
    x = jax.random.normal(k_x, (batch, state_dim + action_dim), jnp.float32)
    params = _init_params(k_p, state_dim, action_dim, hidden_dim, num_q, output_dim)

    # One-time packing (outside the per-step path).
    packed = pack_critic_params(params)
    jax.block_until_ready(packed["wbuf"])

    q_mean, q_std, cov = vectorized_gaussian_critic_forward(x, packed)
    jax.block_until_ready((q_mean, q_std, cov))

    ref_mean, ref_std = _reference_forward(x, params)
    assert q_mean.shape == (num_q * batch, 1)
    assert q_std.shape == (num_q * output_dim, 1)
    assert cov.shape == (num_q * output_dim, 1, 1)
    assert jnp.allclose(q_mean, ref_mean, rtol=1e-5, atol=1e-4)
    assert jnp.allclose(q_std, ref_std, rtol=1e-5, atol=1e-6)

    print("KERNEL_OK")
</pallas_src>

<mosaic_0001>
module attributes {stable_mosaic.version = 11 : i64} {
  func.func @kernel(%arg0: memref<8x32xf32, #tpu.memory_space<vmem>>, %arg1: memref<376x160xf32, #tpu.memory_space<vmem>>, %arg2: memref<8x160xf32, #tpu.memory_space<vmem>>) attributes {dimension_semantics = [], scalar_prefetch = 0 : i64, scratch_operands = 0 : i64, tpu.core_type = #tpu.core_type<tc>} {
    %c0 = arith.constant 0 : index
    %c0_0 = arith.constant 0 : index
    %0 = vector.load %arg0[%c0, %c0_0] : memref<8x32xf32, #tpu.memory_space<vmem>>, vector<8x32xf32>
    %c0_1 = arith.constant 0 : index
    %c0_2 = arith.constant 0 : index
    %1 = vector.load %arg1[%c0_1, %c0_2] : memref<376x160xf32, #tpu.memory_space<vmem>>, vector<32x160xf32>
    %c32 = arith.constant 32 : index
    %c0_3 = arith.constant 0 : index
    %2 = vector.load %arg1[%c32, %c0_3] : memref<376x160xf32, #tpu.memory_space<vmem>>, vector<1x160xf32>
    %cst = arith.constant dense<0.000000e+00> : vector<8x160xf32>
    %3 = tpu.matmul %0, %1, %cst {dimension_numbers = #tpu.dot_dimension_numbers<[1], [0], [0], [1], [0, 0, 1, 1], [], []>} : vector<8x32xf32>, vector<32x160xf32>, vector<8x160xf32> -> vector<8x160xf32>
    %4 = vector.broadcast %2 : vector<1x160xf32> to vector<8x160xf32>
    %5 = arith.addf %3, %4 : vector<8x160xf32>
    %cst_4 = arith.constant 0.000000e+00 : f32
    %6 = vector.broadcast %cst_4 : f32 to vector<8x160xf32>
    %7 = arith.maximumf %5, %6 : vector<8x160xf32>
    %c40 = arith.constant 40 : index
    %c0_5 = arith.constant 0 : index
    %8 = vector.load %arg1[%c40, %c0_5] : memref<376x160xf32, #tpu.memory_space<vmem>>, vector<160x160xf32>
    %c200 = arith.constant 200 : index
    %c0_6 = arith.constant 0 : index
    %9 = vector.load %arg1[%c200, %c0_6] : memref<376x160xf32, #tpu.memory_space<vmem>>, vector<1x160xf32>
    %cst_7 = arith.constant dense<0.000000e+00> : vector<8x160xf32>
    %10 = tpu.matmul %7, %8, %cst_7 {dimension_numbers = #tpu.dot_dimension_numbers<[1], [0], [0], [1], [0, 0, 1, 1], [], []>} : vector<8x160xf32>, vector<160x160xf32>, vector<8x160xf32> -> vector<8x160xf32>
    %11 = vector.broadcast %9 : vector<1x160xf32> to vector<8x160xf32>
    %12 = arith.addf %10, %11 : vector<8x160xf32>
    %cst_8 = arith.constant 0.000000e+00 : f32
    %13 = vector.broadcast %cst_8 : f32 to vector<8x160xf32>
    %14 = arith.maximumf %12, %13 : vector<8x160xf32>
    %c208 = arith.constant 208 : index
    %c0_9 = arith.constant 0 : index
    %15 = vector.load %arg1[%c208, %c0_9] : memref<376x160xf32, #tpu.memory_space<vmem>>, vector<160x160xf32>
    %c368 = arith.constant 368 : index
    %c0_10 = arith.constant 0 : index
    %16 = vector.load %arg1[%c368, %c0_10] : memref<376x160xf32, #tpu.memory_space<vmem>>, vector<1x160xf32>
    %cst_11 = arith.constant dense<0.000000e+00> : vector<8x160xf32>
    %17 = tpu.matmul %14, %15, %cst_11 {dimension_numbers = #tpu.dot_dimension_numbers<[1], [0], [0], [1], [0, 0, 1, 1], [], []>} : vector<8x160xf32>, vector<160x160xf32>, vector<8x160xf32> -> vector<8x160xf32>
    %18 = vector.broadcast %16 : vector<1x160xf32> to vector<8x160xf32>
    %19 = arith.addf %17, %18 : vector<8x160xf32>
    %c0_12 = arith.constant 0 : index
    %c0_13 = arith.constant 0 : index
    %20 = vector.load %arg2[%c0_12, %c0_13] : memref<8x160xf32, #tpu.memory_space<vmem>>, vector<8x160xf32>
    tpu.vector_store %arg2[%c0_12, %c0_13], %19 {strides = array<i32>} : memref<8x160xf32, #tpu.memory_space<vmem>>, vector<8x160xf32>,
    return
  }
}

</mosaic_0001>

<llo_original>
// kernel: tpu_custom_call.1
$region0: #{tpu_custom_call.1}
  #allocation0 [shape = 'u32[]', space=smem, size = 0x4, offset = 0x4, fixed_abs, tag = 'smem constant byte address 0x4 - core index']
  #allocation1 [shape = 'u32[144,128]{1,0:T(1,128)}', space=vmem, size = 0x12000, scoped, tag = 'internal scratch']
  %s0 = inlined_call_operand.vmem [shape: f32[8,32], index: 0, kind: input, shape index: {}]
  %s1 = inlined_call_operand.vmem [shape: f32[376,160], index: 1, kind: input, shape index: {}]
  %s2 = inlined_call_operand.hbm [shape: f32[8,160], index: 2, kind: output, shape index: {}]
  %s3 = sld [smem:[#allocation0]]
  $region18: #{tpu_custom_call.1} parent=0
    _
  %s5 = ssub.s32 1, %s3
  %s6 = scalar_select 0, %s5, %s3
  $region1: #{tpu_custom_call.1} parent=0
    #allocation2 [shape = 'u8[8192]{0}', space=vmem, size = 0x2000, scoped, tag = 'output window, operand 0, single buffered']
    #allocation3 [shape = 's32[1]{0}', space=sflag, size = 0x4, scoped, tag = 'scoped memory for tpu_custom_call.1']
    %7 = vsyncpa [#allocation3], 0
    // Predicated region
    $region2: #{tpu_custom_call.1} parent=1 // pred_check
      _
    $region3: #{tpu_custom_call.1} parent=1 // pred_check_branch
      %9 = sbr.rel (0) target = $region5
    $region4: #{tpu_custom_call.1} parent=1 // pred_region
      _
    $region5: #{tpu_custom_call.1} parent=1 // pred_fallthru
      _
    // Predicated region
    $region6: #{tpu_custom_call.1} parent=1 // pred_check
      _
    $region7: #{tpu_custom_call.1} parent=1 // pred_check_branch
      %11 = sbr.rel (0) target = $region9
    $region8: #{tpu_custom_call.1} parent=1 // pred_region
      _
    $region9: #{tpu_custom_call.1} parent=1 // pred_fallthru
      _
    %v12 = vld [vmem:[%s0] sm:$0xff]
    %v13 = vld [vmem:[%s1] sm:$0xff]
    %v14 = vld [vmem:[%s1 + $0x8] sm:$0xff]
    %v15 = vld [vmem:[%s1 + $0x10] sm:$0xff]
    %v16 = vld [vmem:[%s1 + $0x18] sm:$0xff]
    %v17 = vld [vmem:[%s1 + $0x20] sm:$0xff]
    %v18 = vld [vmem:[%s1 + $0x28] sm:$0xff]
    %v19 = vld [vmem:[%s1 + $0x30] sm:$0xff]
    %v20 = vld [vmem:[%s1 + $0x38] sm:$0xff]
    %s21 = scalar_lea.vmem %s1, 64
    %v22 = vld [vmem:[%s21] ss:$8 sm:$0x3]
    %v24 = vlaneseq
    %v25 = vshrl.u32 %v24, 7
    %v26 = vsub.s32 0, %v25
    %v27 = vrot.slane %v22, %v26
    %v28 = vlaneseq
    %v29 = vshrl.u32 %v28, 7
    %v30 = vsub.s32 1, %v29
    %v31 = vrot.slane %v22, %v30
    %vm34 = vcmask 261120
    %v36 = vsel %vm34, %v12, 0
    %38 = vmatprep.subr.mxu0 %v14
    %39 = vmatpush1.msra.mxu0 %v13
    %40 = vmatprep.subr.mxu0 %v16
    %41 = vmatpush1.msra.mxu0 %v15
    %42 = vmatprep.subr.mxu0 %v18
    %43 = vmatpush1.msra.mxu0 %v17
    %44 = vmatprep.subr.mxu0 %v20
    %45 = vmatpush1.msra.mxu0 %v19
    %46 = vmatprep.subr.mxu0 0.0
    %47 = vmatpush1.msra.mxu0 0.0
    %48 = vmatprep.subr.mxu0 0.0
    %49 = vmatpush1.msra.mxu0 0.0
    %50 = vmatprep.subr.mxu0 0.0
    %51 = vmatpush1.msra.mxu0 0.0
    %52 = vmatprep.subr.mxu0 0.0
    %53 = vmatpush1.msra.mxu0 0.0
    %54 = vmatprep.subr.mxu0 0.0
    %55 = vmatpush1.msra.mxu0 0.0
    %56 = vmatprep.subr.mxu0 0.0
    %57 = vmatpush1.msra.mxu0 0.0
    %58 = vmatprep.subr.mxu0 0.0
    %59 = vmatpush1.msra.mxu0 0.0
    %60 = vmatprep.subr.mxu0 0.0
    %61 = vmatpush1.msra.mxu0 0.0
    %62 = vmatprep.subr.mxu0 0.0
    %63 = vmatpush1.msra.mxu0 0.0
    %64 = vmatprep.subr.mxu0 0.0
    %65 = vmatpush1.msra.mxu0 0.0
    %66 = vmatprep.subr.mxu0 0.0
    %67 = vmatpush1.msra.mxu0 0.0
    %68 = vmatprep.subr.mxu0 0.0
    %69 = vmatpush1.msra.mxu0 0.0
    %70 = vmatprep.subr.mxu0 0.0
    %71 = vmatpush1.msra.mxu0 0.0
    %72 = vmatprep.subr.mxu0 0.0
    %73 = vmatpush1.msra.mxu0 0.0
    %74 = vmatprep.subr.mxu0 0.0
    %75 = vmatpush1.msra.mxu0 0.0
    %76 = vmatprep.subr.mxu0 0.0
    %77 = vmatpush1.msra.mxu0 0.0
    %78 = vmatprep.subr.mxu0 0.0
    %79 = vmatpush1.msra.mxu0 0.0
    %80 = vmatprep.subr.mxu0 0.0
    %81 = vmatpush1.msra.mxu0 0.0
    %82 = vmatprep.subr.mxu0 0.0
    %83 = vmatpush1.msra.mxu0 0.0
    %84 = vmatprep.subr.mxu0 0.0
    %85 = vmatpush1.msra.mxu0 0.0
    %86 = vmatprep.subr.mxu0 0.0
    %87 = vmatpush1.msra.mxu0 0.0
    %88 = vmatprep.subr.mxu0 0.0
    %89 = vmatpush1.msra.mxu0 0.0
    %90 = vmatprep.subr.mxu0 0.0
    %91 = vmatpush1.msra.mxu0 0.0
    %92 = vmatprep.subr.mxu0 0.0
    %93 = vmatpush1.msra.mxu0 0.0
    %94 = vmatprep.subr.mxu0 0.0
    %95 = vmatpush1.msra.mxu0 0.0
    %96 = vmatprep.subr.mxu0 0.0
    %97 = vmatpush1.msra.mxu0 0.0
    %98 = vmatprep.subr.mxu0 0.0
    %99 = vmatpush1.msra.mxu0 0.0
    %100 = vmatprep.subr.mxu0 0.0
    %101 = vmatpush1.msra.mxu0 0.0
    %102 = vmatprep.mubr.f32.mxu0 0.0
    %103 = vmatmul.mubr.f32.gmra.mrb[0].mxu0 %v36
    %v104 = vpop.f32.mrb[0].mxu0
    %v105 = vadd.f32 %v27, %v104
    %v106 = vpop.f32.mrb[0].mxu0
    %v107 = vadd.f32 %v31, %v106
    %108 = vdwg.mxu0
    %v109 = vmax.f32 %v105, 0.0
    %v110 = vmax.f32 %v107, 0.0
    %v111 = vld [vmem:[%s1 + $0x50] sm:$0xff]
    %v112 = vld [vmem:[%s1 + $0x58] sm:$0xff]
    %v113 = vld [vmem:[%s1 + $0x60] sm:$0xff]
    %v114 = vld [vmem:[%s1 + $0x68] sm:$0xff]
    %v115 = vld [vmem:[%s1 + $0x70] sm:$0xff]
    %v116 = vld [vmem:[%s1 + $0x78] sm:$0xff]
    %v117 = vld [vmem:[%s1 + $0x80] sm:$0xff]
    %v118 = vld [vmem:[%s1 + $0x88] sm:$0xff]
    %v119 = vld [vmem:[%s1 + $0x90] sm:$0xff]
    %v120 = vld [vmem:[%s1 + $0x98] sm:$0xff]
    %v121 = vld [vmem:[%s1 + $0xa0] sm:$0xff]
    %v122 = vld [vmem:[%s1 + $0xa8] sm:$0xff]
    %v123 = vld [vmem:[%s1 + $0xb0] sm:$0xff]
    %v124 = vld [vmem:[%s1 + $0xb8] sm:$0xff]
    %v125 = vld [vmem:[%s1 + $0xc0] sm:$0xff]
    %v126 = vld [vmem:[%s1 + $0xc8] sm:$0xff]
    %v127 = vld [vmem:[%s1 + $0xd0] sm:$0xff]
    %v128 = vld [vmem:[%s1 + $0xd8] sm:$0xff]
    %v129 = vld [vmem:[%s1 + $0xe0] sm:$0xff]
    %v130 = vld [vmem:[%s1 + $0xe8] sm:$0xff]
    %v131 = vld [vmem:[%s1 + $0xf0] sm:$0xff]
    %v132 = vld [vmem:[%s1 + $0xf8] sm:$0xff]
    %v133 = vld [vmem:[%s1 + $0x100] sm:$0xff]
    %v134 = vld [vmem:[%s1 + $0x108] sm:$0xff]
    %v135 = vld [vmem:[%s1 + $0x110] sm:$0xff]
    %v136 = vld [vmem:[%s1 + $0x118] sm:$0xff]
    %v137 = vld [vmem:[%s1 + $0x120] sm:$0xff]
    %v138 = vld [vmem:[%s1 + $0x128] sm:$0xff]
    %v139 = vld [vmem:[%s1 + $0x130] sm:$0xff]
    %v140 = vld [vmem:[%s1 + $0x138] sm:$0xff]
    %v141 = vld [vmem:[%s1 + $0x140] sm:$0xff]
    %v142 = vld [vmem:[%s1 + $0x148] sm:$0xff]
    %v143 = vld [vmem:[%s1 + $0x150] sm:$0xff]
    %v144 = vld [vmem:[%s1 + $0x158] sm:$0xff]
    %v145 = vld [vmem:[%s1 + $0x160] sm:$0xff]
    %v146 = vld [vmem:[%s1 + $0x168] sm:$0xff]
    %v147 = vld [vmem:[%s1 + $0x170] sm:$0xff]
    %v148 = vld [vmem:[%s1 + $0x178] sm:$0xff]
    %v149 = vld [vmem:[%s1 + $0x180] sm:$0xff]
    %v150 = vld [vmem:[%s1 + $0x188] sm:$0xff]
    %s151 = scalar_lea.vmem %s1, 400
    %v152 = vld [vmem:[%s151] ss:$8 sm:$0x3]
    %v154 = vlaneseq
    %v155 = vshrl.u32 %v154, 7
    %v156 = vsub.s32 0, %v155
    %v157 = vrot.slane %v152, %v156
    %v158 = vlaneseq
    %v159 = vshrl.u32 %v158, 7
    %v160 = vsub.s32 1, %v159
    %v161 = vrot.slane %v152, %v160
    %v165 = vsel %vm34, %v110, 0
    %167 = vmatprep.subr.mxu0 %v112
    %168 = vmatpush1.msra.mxu0 %v111
    %169 = vmatprep.subr.mxu0 %v114
    %170 = vmatpush1.msra.mxu0 %v113
    %171 = vmatprep.subr.mxu0 %v116
    %172 = vmatpush1.msra.mxu0 %v115
    %173 = vmatprep.subr.mxu0 %v118
    %174 = vmatpush1.msra.mxu0 %v117
    %175 = vmatprep.subr.mxu0 %v120
    %176 = vmatpush1.msra.mxu0 %v119
    %177 = vmatprep.subr.mxu0 %v122
    %178 = vmatpush1.msra.mxu0 %v121
    %179 = vmatprep.subr.mxu0 %v124
    %180 = vmatpush1.msra.mxu0 %v123
    %181 = vmatprep.subr.mxu0 %v126
    %182 = vmatpush1.msra.mxu0 %v125
    %183 = vmatprep.subr.mxu0 %v128
    %184 = vmatpush1.msra.mxu0 %v127
    %185 = vmatprep.subr.mxu0 %v130
    %186 = vmatpush1.msra.mxu0 %v129
    %187 = vmatprep.subr.mxu0 %v132
    %188 = vmatpush1.msra.mxu0 %v131
    %189 = vmatprep.subr.mxu0 %v134
    %190 = vmatpush1.msra.mxu0 %v133
    %191 = vmatprep.subr.mxu0 %v136
    %192 = vmatpush1.msra.mxu0 %v135
    %193 = vmatprep.subr.mxu0 %v138
    %194 = vmatpush1.msra.mxu0 %v137
    %195 = vmatprep.subr.mxu0 %v140
    %196 = vmatpush1.msra.mxu0 %v139
    %197 = vmatprep.subr.mxu0 %v142
    %198 = vmatpush1.msra.mxu0 %v141
    %199 = vmatprep.subr.mxu0 %v144
    %200 = vmatpush1.msra.mxu0 %v143
    %201 = vmatprep.subr.mxu0 %v146
    %202 = vmatpush1.msra.mxu0 %v145
    %203 = vmatprep.subr.mxu0 %v148
    %204 = vmatpush1.msra.mxu0 %v147
    %205 = vmatprep.subr.mxu0 %v150
    %206 = vmatpush1.msra.mxu0 %v149
    %207 = vmatprep.subr.mxu0 0.0
    %208 = vmatpush1.msra.mxu0 0.0
    %209 = vmatprep.subr.mxu0 0.0
    %210 = vmatpush1.msra.mxu0 0.0
    %211 = vmatprep.subr.mxu0 0.0
    %212 = vmatpush1.msra.mxu0 0.0
    %213 = vmatprep.subr.mxu0 0.0
    %214 = vmatpush1.msra.mxu0 0.0
    %215 = vmatprep.subr.mxu0 0.0
    %216 = vmatpush1.msra.mxu0 0.0
    %217 = vmatprep.subr.mxu0 0.0
    %218 = vmatpush1.msra.mxu0 0.0
    %219 = vmatprep.subr.mxu0 0.0
    %220 = vmatpush1.msra.mxu0 0.0
    %221 = vmatprep.subr.mxu0 0.0
    %222 = vmatpush1.msra.mxu0 0.0
    %223 = vmatprep.subr.mxu0 0.0
    %224 = vmatpush1.msra.mxu0 0.0
    %225 = vmatprep.subr.mxu0 0.0
    %226 = vmatpush1.msra.mxu0 0.0
    %227 = vmatprep.subr.mxu0 0.0
    %228 = vmatpush1.msra.mxu0 0.0
    %229 = vmatprep.subr.mxu0 0.0
    %230 = vmatpush1.msra.mxu0 0.0
    %231 = vmatprep.mubr.f32.mxu0 %v165
    %232 = vmatmul.mubr.f32.gmra.mrb[0].mxu0 %v109
    %v233 = vpop.f32.mrb[0].mxu0
    %v234 = vadd.f32 %v157, %v233
    %v235 = vpop.f32.mrb[0].mxu0
    %v236 = vadd.f32 %v161, %v235
    %237 = vdwg.mxu0
    %v238 = vmax.f32 %v234, 0.0
    %v239 = vmax.f32 %v236, 0.0
    %v240 = vld [vmem:[%s1 + $0x1a0] sm:$0xff]
    %v241 = vld [vmem:[%s1 + $0x1a8] sm:$0xff]
    %v242 = vld [vmem:[%s1 + $0x1b0] sm:$0xff]
    %v243 = vld [vmem:[%s1 + $0x1b8] sm:$0xff]
    %v244 = vld [vmem:[%s1 + $0x1c0] sm:$0xff]
    %v245 = vld [vmem:[%s1 + $0x1c8] sm:$0xff]
    %v246 = vld [vmem:[%s1 + $0x1d0] sm:$0xff]
    %v247 = vld [vmem:[%s1 + $0x1d8] sm:$0xff]
    %v248 = vld [vmem:[%s1 + $0x1e0] sm:$0xff]
    %v249 = vld [vmem:[%s1 + $0x1e8] sm:$0xff]
    %v250 = vld [vmem:[%s1 + $0x1f0] sm:$0xff]
    %v251 = vld [vmem:[%s1 + $0x1f8] sm:$0xff]
    %v252 = vld [vmem:[%s1 + $0x200] sm:$0xff]
    %v253 = vld [vmem:[%s1 + $0x208] sm:$0xff]
    %v254 = vld [vmem:[%s1 + $0x210] sm:$0xff]
    %v255 = vld [vmem:[%s1 + $0x218] sm:$0xff]
    %v256 = vld [vmem:[%s1 + $0x220] sm:$0xff]
    %v257 = vld [vmem:[%s1 + $0x228] sm:$0xff]
    %v258 = vld [vmem:[%s1 + $0x230] sm:$0xff]
    %v259 = vld [vmem:[%s1 + $0x238] sm:$0xff]
    %v260 = vld [vmem:[%s1 + $0x240] sm:$0xff]
    %v261 = vld [vmem:[%s1 + $0x248] sm:$0xff]
    %v262 = vld [vmem:[%s1 + $0x250] sm:$0xff]
    %v263 = vld [vmem:[%s1 + $0x258] sm:$0xff]
    %v264 = vld [vmem:[%s1 + $0x260] sm:$0xff]
    %v265 = vld [vmem:[%s1 + $0x268] sm:$0xff]
    %v266 = vld [vmem:[%s1 + $0x270] sm:$0xff]
    %v267 = vld [vmem:[%s1 + $0x278] sm:$0xff]
    %v268 = vld [vmem:[%s1 + $0x280] sm:$0xff]
    %v269 = vld [vmem:[%s1 + $0x288] sm:$0xff]
    %v270 = vld [vmem:[%s1 + $0x290] sm:$0xff]
    %v271 = vld [vmem:[%s1 + $0x298] sm:$0xff]
    %v272 = vld [vmem:[%s1 + $0x2a0] sm:$0xff]
    %v273 = vld [vmem:[%s1 + $0x2a8] sm:$0xff]
    %v274 = vld [vmem:[%s1 + $0x2b0] sm:$0xff]
    %v275 = vld [vmem:[%s1 + $0x2b8] sm:$0xff]
    %v276 = vld [vmem:[%s1 + $0x2c0] sm:$0xff]
    %v277 = vld [vmem:[%s1 + $0x2c8] sm:$0xff]
    %v278 = vld [vmem:[%s1 + $0x2d0] sm:$0xff]
    %v279 = vld [vmem:[%s1 + $0x2d8] sm:$0xff]
    %s280 = scalar_lea.vmem %s1, 736
    %v281 = vld [vmem:[%s280] ss:$8 sm:$0x3]
    %v283 = vlaneseq
    %v284 = vshrl.u32 %v283, 7
    %v285 = vsub.s32 0, %v284
    %v286 = vrot.slane %v281, %v285
    %v287 = vlaneseq
    %v288 = vshrl.u32 %v287, 7
    %v289 = vsub.s32 1, %v288
    %v290 = vrot.slane %v281, %v289
    %v294 = vsel %vm34, %v239, 0
    %296 = vmatprep.subr.mxu0 %v241
    %297 = vmatpush1.msra.mxu0 %v240
    %298 = vmatprep.subr.mxu0 %v243
    %299 = vmatpush1.msra.mxu0 %v242
    %300 = vmatprep.subr.mxu0 %v245
    %301 = vmatpush1.msra.mxu0 %v244
    %302 = vmatprep.subr.mxu0 %v247
    %303 = vmatpush1.msra.mxu0 %v246
    %304 = vmatprep.subr.mxu0 %v249
    %305 = vmatpush1.msra.mxu0 %v248
    %306 = vmatprep.subr.mxu0 %v251
    %307 = vmatpush1.msra.mxu0 %v250
    %308 = vmatprep.subr.mxu0 %v253
    %309 = vmatpush1.msra.mxu0 %v252
    %310 = vmatprep.subr.mxu0 %v255
    %311 = vmatpush1.msra.mxu0 %v254
    %312 = vmatprep.subr.mxu0 %v257
    %313 = vmatpush1.msra.mxu0 %v256
    %314 = vmatprep.subr.mxu0 %v259
    %315 = vmatpush1.msra.mxu0 %v258
    %316 = vmatprep.subr.mxu0 %v261
    %317 = vmatpush1.msra.mxu0 %v260
    %318 = vmatprep.subr.mxu0 %v263
    %319 = vmatpush1.msra.mxu0 %v262
    %320 = vmatprep.subr.mxu0 %v265
    %321 = vmatpush1.msra.mxu0 %v264
    %322 = vmatprep.subr.mxu0 %v267
    %323 = vmatpush1.msra.mxu0 %v266
    %324 = vmatprep.subr.mxu0 %v269
    %325 = vmatpush1.msra.mxu0 %v268
    %326 = vmatprep.subr.mxu0 %v271
    %327 = vmatpush1.msra.mxu0 %v270
    %328 = vmatprep.subr.mxu0 %v273
    %329 = vmatpush1.msra.mxu0 %v272
    %330 = vmatprep.subr.mxu0 %v275
    %331 = vmatpush1.msra.mxu0 %v274
    %332 = vmatprep.subr.mxu0 %v277
    %333 = vmatpush1.msra.mxu0 %v276
    %334 = vmatprep.subr.mxu0 %v279
    %335 = vmatpush1.msra.mxu0 %v278
    %336 = vmatprep.subr.mxu0 0.0
    %337 = vmatpush1.msra.mxu0 0.0
    %338 = vmatprep.subr.mxu0 0.0
    %339 = vmatpush1.msra.mxu0 0.0
    %340 = vmatprep.subr.mxu0 0.0
    %341 = vmatpush1.msra.mxu0 0.0
    %342 = vmatprep.subr.mxu0 0.0
    %343 = vmatpush1.msra.mxu0 0.0
    %344 = vmatprep.subr.mxu0 0.0
    %345 = vmatpush1.msra.mxu0 0.0
    %346 = vmatprep.subr.mxu0 0.0
    %347 = vmatpush1.msra.mxu0 0.0
    %348 = vmatprep.subr.mxu0 0.0
    %349 = vmatpush1.msra.mxu0 0.0
    %350 = vmatprep.subr.mxu0 0.0
    %351 = vmatpush1.msra.mxu0 0.0
    %352 = vmatprep.subr.mxu0 0.0
    %353 = vmatpush1.msra.mxu0 0.0
    %354 = vmatprep.subr.mxu0 0.0
    %355 = vmatpush1.msra.mxu0 0.0
    %356 = vmatprep.subr.mxu0 0.0
    %357 = vmatpush1.msra.mxu0 0.0
    %358 = vmatprep.subr.mxu0 0.0
    %359 = vmatpush1.msra.mxu0 0.0
    %360 = vmatprep.mubr.f32.mxu0 %v294
    %361 = vmatmul.mubr.f32.gmra.mrb[0].mxu0 %v238
    %v362 = vpop.f32.mrb[0].mxu0
    %v363 = vadd.f32 %v286, %v362
    %v364 = vpop.f32.mrb[0].mxu0
    %v365 = vadd.f32 %v290, %v364
    %366 = vdwg.mxu0
    %367 = vst [vmem:[#allocation2] sm:$0xff] %v363
    %368 = vst.msk [vmem:[#allocation2 + $0x8] sm:$0xff] %vm34, %v365
    // Predicated region
    $region10: #{tpu_custom_call.1} parent=1 // pred_check
      _
    $region11: #{tpu_custom_call.1} parent=1 // pred_check_branch
      %370 = sbr.rel (0) target = $region13
    $region12: #{tpu_custom_call.1} parent=1 // pred_region
      %s372 = ssub.s32 256, 256
      %373 = vsyncadd [#allocation3], %s372
      %s375 = sshll.u32 [#allocation2], 4
      %s376 = int_to_ptr.vmem [resolvable:$true] %s375
      %378 = dma.vmem_to_hbm [thread:$0]  %s376, 256, %s2, [#allocation3]
    $region13: #{tpu_custom_call.1} parent=1 // pred_fallthru
      _
    // Predicated region
    $region14: #{tpu_custom_call.1} parent=1 // pred_check
      _
    $region15: #{tpu_custom_call.1} parent=1 // pred_check_branch
      %380 = sbr.rel (0) target = $region17
    $region16: #{tpu_custom_call.1} parent=1 // pred_region
      %381 = dma.done [#allocation3], 256
    $region17: #{tpu_custom_call.1} parent=1 // pred_fallthru
      _
    %382 = vsyncpa [#allocation3], 1

</llo_original>
